<compile_context>
chip_gen: v7x
topology: tpu7x:2x2x1
jax: 0.10.0
libtpu: 0.0.40
codegen_flags: <defaults>
</compile_context>

<pallas_src>
import jax
import jax.numpy as jnp
from jax.experimental import pallas as pl
from jax.experimental.pallas import tpu as pltpu

_LANE = 128
# ~2 MiB per block: (1 input + 1 output) x 2 double-buffers x 2 MiB = 8 MiB,
# under the scoped-VMEM default on every generation (16 MiB v5e, 32 MiB v6e/v7x).
_TARGET_BLOCK_BYTES = 2 * 1024 * 1024
_COL_CANDIDATES = (4096, 2048, 1024, 512, 256, 128)  # widest (most lane-dense) first


def _hard_sigmoid_kernel(x_ref, o_ref):
    x = x_ref[...]
    # relu6(x + 3) / 6 == clip(x + 3, 0, 6) * (1/6)
    o_ref[...] = (jnp.clip(x + 3.0, 0.0, 6.0) * (1.0 / 6.0)).astype(o_ref.dtype)


def _sublane_multiple(dtype) -> int:
    # f32 -> 8, bf16/f16 -> 16, int8/fp8 -> 32 (sub-32-bit dtypes pack along sublanes).
    return max(8, 32 // jnp.dtype(dtype).itemsize)


def _run_2d(x2d: jax.Array, sub_mult: int) -> jax.Array:
    """Run the elementwise kernel over a lane-dense (rows, cols) slab."""
    rows, cols = x2d.shape
    itemsize = jnp.dtype(x2d.dtype).itemsize
    max_br = max(1, _TARGET_BLOCK_BYTES // (cols * itemsize))
    if rows <= max_br:
        br = rows  # single full-extent block along rows (always a legal block dim)
    else:
        # rows is guaranteed sublane-aligned by the caller on this path.
        br = max(sub_mult, (max_br // sub_mult) * sub_mult)
    grid = (pl.cdiv(rows, br),)

    return pl.pallas_call(
        _hard_sigmoid_kernel,
        out_shape=jax.ShapeDtypeStruct((rows, cols), x2d.dtype),
        grid=grid,
        in_specs=[pl.BlockSpec((br, cols), lambda i: (i, 0))],
        out_specs=pl.BlockSpec((br, cols), lambda i: (i, 0)),
        compiler_params=pltpu.CompilerParams(
            dimension_semantics=("parallel",),  # shards across TCs on v7x megacore
        ),
    )(x2d)


def hard_sigmoid(x: jax.Array) -> jax.Array:
    """Elementwise hard-sigmoid matching PyTorch ReLU6(x + 3) / 6 semantics."""
    orig_shape = x.shape
    flat = x.reshape(-1)
    n = flat.shape[0]
    if n == 0:
        return x

    dtype = x.dtype
    itemsize = jnp.dtype(dtype).itemsize
    sub_mult = _sublane_multiple(dtype)

    # --- Fast path: zero-copy lane-dense 2D view (reshape of contiguous data is free).
    rows = cols = None
    # Prefer a layout whose row count is sublane-aligned so big inputs tile cleanly.
    for c in _COL_CANDIDATES:
        if n % c == 0 and (n // c) % sub_mult == 0:
            rows, cols = n // c, c
            break
    if rows is None:
        # Small inputs: any 128-aligned cols is fine if the whole thing fits one block.
        for c in _COL_CANDIDATES:
            if n % c == 0 and (n // c) <= max(1, _TARGET_BLOCK_BYTES // (c * itemsize)):
                rows, cols = n // c, c
                break

    if rows is not None:
        out_flat = _run_2d(flat.reshape(rows, cols), sub_mult).reshape(n)
    else:
        # --- Ragged / pathological sizes: pad once, run, slice the tail off.
        cols = _LANE
        chunk = sub_mult * cols
        padded_n = pl.cdiv(n, chunk) * chunk
        padded = jnp.pad(flat, (0, padded_n - n))
        out2d = _run_2d(padded.reshape(padded_n // cols, cols), sub_mult)
        out_flat = out2d.reshape(padded_n)[:n]

    return out_flat.reshape(orig_shape)


if __name__ == "__main__":
    key = jax.random.PRNGKey(0)

    # NCHW input, as the PPLCNet conv backbone would produce.
    x = jax.random.normal(key, (2, 4, 16, 16), dtype=jnp.float32) * 4.0
    y = jax.block_until_ready(hard_sigmoid(x))
    y_ref = jnp.clip(x + 3.0, 0.0, 6.0) / 6.0
    assert y.shape == x.shape and y.dtype == x.dtype
    assert jnp.allclose(y, y_ref, atol=1e-6), "f32 mismatch vs reference"

    # bf16 input exercises the sublane-packed (16, 128)-aligned path.
    xb = (jax.random.normal(jax.random.PRNGKey(1), (2, 4, 16, 16)) * 4.0).astype(jnp.bfloat16)
    yb = jax.block_until_ready(hard_sigmoid(xb))
    yb_ref = jnp.clip(xb + 3.0, 0.0, 6.0) * (1.0 / 6.0)
    assert yb.shape == xb.shape and yb.dtype == jnp.bfloat16
    assert jnp.allclose(yb.astype(jnp.float32), yb_ref.astype(jnp.float32), atol=1e-2)

    # Ragged element count exercises the pad-once fallback path.
    xr = jax.random.normal(jax.random.PRNGKey(2), (3, 5, 7), dtype=jnp.float32) * 4.0
    yr = jax.block_until_ready(hard_sigmoid(xr))
    yr_ref = jnp.clip(xr + 3.0, 0.0, 6.0) / 6.0
    assert yr.shape == xr.shape
    assert jnp.allclose(yr, yr_ref, atol=1e-6), "ragged mismatch vs reference"

    print("KERNEL_OK")
</pallas_src>

<mosaic_0001>
module attributes {stable_mosaic.version = 11 : i64} {
  func.func @_hard_sigmoid_kernel(%arg0: i32, %arg1: memref<8x256xf32, #tpu.memory_space<vmem>>, %arg2: memref<8x256xf32, #tpu.memory_space<vmem>>) attributes {dimension_semantics = [#tpu.dimension_semantics<parallel>], iteration_bounds = array<i64: 1>, scalar_prefetch = 0 : i64, scratch_operands = 0 : i64, tpu.core_type = #tpu.core_type<tc>, window_params = [{transform_indices = @transform_0, window_bounds = array<i64: 8, 256>}, {transform_indices = @transform_1, window_bounds = array<i64: 8, 256>}]} {
    %c0 = arith.constant 0 : index
    %c0_0 = arith.constant 0 : index
    %0 = vector.load %arg1[%c0, %c0_0] : memref<8x256xf32, #tpu.memory_space<vmem>>, vector<8x256xf32>
    %cst = arith.constant 3.000000e+00 : f32
    %1 = vector.broadcast %cst : f32 to vector<8x256xf32>
    %2 = arith.addf %0, %1 : vector<8x256xf32>
    %cst_1 = arith.constant 0.000000e+00 : f32
    %cst_2 = arith.constant 6.000000e+00 : f32
    %3 = vector.broadcast %cst_1 : f32 to vector<8x256xf32>
    %4 = arith.maximumf %3, %2 : vector<8x256xf32>
    %5 = vector.broadcast %cst_2 : f32 to vector<8x256xf32>
    %6 = arith.minimumf %5, %4 : vector<8x256xf32>
    %cst_3 = arith.constant 0.166666672 : f32
    %7 = vector.broadcast %cst_3 : f32 to vector<8x256xf32>
    %8 = arith.mulf %6, %7 : vector<8x256xf32>
    %c0_4 = arith.constant 0 : index
    %c0_5 = arith.constant 0 : index
    %9 = vector.load %arg2[%c0_4, %c0_5] : memref<8x256xf32, #tpu.memory_space<vmem>>, vector<8x256xf32>
    tpu.vector_store %arg2[%c0_4, %c0_5], %8 {strides = array<i32>} : memref<8x256xf32, #tpu.memory_space<vmem>>, vector<8x256xf32>,
    return
  }
  func.func @transform_0(%arg0: i32) -> (i32, i32) {
    %c0_i32 = arith.constant 0 : i32
    %c0_i32_0 = arith.constant 0 : i32
    return %arg0, %c0_i32 : i32, i32
  }
  func.func @transform_1(%arg0: i32) -> (i32, i32) {
    %c0_i32 = arith.constant 0 : i32
    %c0_i32_0 = arith.constant 0 : i32
    return %arg0, %c0_i32 : i32, i32
  }
}

</mosaic_0001>

<llo_original>
// kernel: tpu_custom_call.1
$region0: #{tpu_custom_call.1}
  #allocation0 [shape = 'u32[]', space=smem, size = 0x4, offset = 0x4, fixed_abs, tag = 'smem constant byte address 0x4 - core index']
  #allocation1 [shape = 'u32[144,128]{1,0:T(1,128)}', space=vmem, size = 0x12000, scoped, tag = 'internal scratch']
  %s0 = inlined_call_operand.hbm [shape: f32[8,256], index: 0, kind: input, shape index: {}]
  %s1 = inlined_call_operand.hbm [shape: f32[8,256], index: 1, kind: output, shape index: {}]
  %s2 = sld [smem:[#allocation0]]
  $region18: #{tpu_custom_call.1} parent=0
    _
  %s4 = ssub.s32 1, %s2
  %s5 = scalar_select 0, %s4, %s2
  $region1: #{tpu_custom_call.1} parent=0
    #allocation2 [shape = 'u8[8192]{0}', space=vmem, size = 0x2000, scoped, tag = 'input window, operand 0, single buffered']
    #allocation3 [shape = 's32[1]{0}', space=sflag, size = 0x4, scoped, tag = 'scoped memory for tpu_custom_call.1']
    #allocation4 [shape = 's32[1]{0}', space=sflag, size = 0x4, scoped, tag = 'scoped memory for tpu_custom_call.1']
    #allocation5 [shape = 'u8[8192]{0}', space=vmem, size = 0x2000, scoped, tag = 'output window, operand 0, single buffered']
    %6 = vsyncpa [#allocation3], 0
    %7 = vsyncpa [#allocation4], 0
    // Predicated region
    $region2: #{tpu_custom_call.1} parent=1 // pred_check
      _
    $region3: #{tpu_custom_call.1} parent=1 // pred_check_branch
      %9 = sbr.rel (0) target = $region5
    $region4: #{tpu_custom_call.1} parent=1 // pred_region
      %s11 = ssub.s32 256, 256
      %12 = vsyncadd [#allocation3], %s11
      %s14 = sshll.u32 [#allocation2], 4
      %s15 = int_to_ptr.vmem [resolvable:$true] %s14
      %17 = dma.hbm_to_vmem [thread:$0]  %s0, 256, %s15, [#allocation3]
    $region5: #{tpu_custom_call.1} parent=1 // pred_fallthru
      _
    // Predicated region
    $region6: #{tpu_custom_call.1} parent=1 // pred_check
      _
    $region7: #{tpu_custom_call.1} parent=1 // pred_check_branch
      %19 = sbr.rel (0) target = $region9
    $region8: #{tpu_custom_call.1} parent=1 // pred_region
      %20 = dma.done [#allocation3], 256
    $region9: #{tpu_custom_call.1} parent=1 // pred_fallthru
      _
    %v21 = vld [vmem:[#allocation2] sm:$0xff]
    %v22 = vld [vmem:[#allocation2 + $0x8] sm:$0xff]
    %v23 = vadd.f32 %v21, 3.0
    %v24 = vadd.f32 %v22, 3.0
    %v25 = vmax.f32 %v23, 0.0
    %v26 = vmax.f32 %v24, 0.0
    %v27 = vmin.f32 %v25, 6.0
    %v28 = vmin.f32 %v26, 6.0
    %v29 = vmul.f32 %v27, 0.16666667
    %v30 = vmul.f32 %v28, 0.16666667
    %31 = vst [vmem:[#allocation5] sm:$0xff] %v29
    %32 = vst [vmem:[#allocation5 + $0x8] sm:$0xff] %v30
    // Predicated region
    $region10: #{tpu_custom_call.1} parent=1 // pred_check
      _
    $region11: #{tpu_custom_call.1} parent=1 // pred_check_branch
      %34 = sbr.rel (0) target = $region13
    $region12: #{tpu_custom_call.1} parent=1 // pred_region
      %s36 = ssub.s32 256, 256
      %37 = vsyncadd [#allocation4], %s36
      %s39 = sshll.u32 [#allocation5], 4
      %s40 = int_to_ptr.vmem [resolvable:$true] %s39
      %42 = dma.vmem_to_hbm [thread:$0]  %s40, 256, %s1, [#allocation4]
    $region13: #{tpu_custom_call.1} parent=1 // pred_fallthru
      _
    // Predicated region
    $region14: #{tpu_custom_call.1} parent=1 // pred_check
      _
    $region15: #{tpu_custom_call.1} parent=1 // pred_check_branch
      %44 = sbr.rel (0) target = $region17
    $region16: #{tpu_custom_call.1} parent=1 // pred_region
      %45 = dma.done [#allocation4], 256
    $region17: #{tpu_custom_call.1} parent=1 // pred_fallthru
      _
    %46 = vsyncpa [#allocation3], 1
    %47 = vsyncpa [#allocation4], 1

</llo_original>
